<compile_context>
chip_gen: v7x
topology: tpu7x:2x2x1
jax: 0.10.0
libtpu: 0.0.40
codegen_flags: <defaults>
</compile_context>

<pallas_src>
import jax
import jax.numpy as jnp
from jax.experimental import pallas as pl
from jax.experimental.pallas import tpu as pltpu


def _maxpool_kernel(x_ref, o_ref):
    # x_ref: (B, 56, 224) -- per image, row-pair layout:
    #          x_ref[b, p,   0:112] = original row 2p     (rows 0,2,...,110)
    #          x_ref[b, p, 112:224] = original row 2p + 1 (rows 1,3,...,111)
    # o_ref: (B, 56, 112) -- 3x3 / stride-2 max evaluated at every original column c;
    #          the valid outputs live at even lanes c = 0,2,...,110 (wrapper keeps them).
    B = x_ref.shape[0]

    def colslide(t):
        # t: (R, 112).  Returns max(t[c-1], t[c], t[c+1]) per lane, with the module's
        # zero padding at c == -1 (left pad column) and a harmless zero at c == 112.
        R = t.shape[0]
        z = jnp.zeros((R, 1), dtype=t.dtype)
        left = jnp.concatenate([z, t[:, 0:111]], axis=1)     # t[c-1], 0-pad at c=0
        right = jnp.concatenate([t[:, 1:112], z], axis=1)    # t[c+1]
        return jnp.maximum(jnp.maximum(t, left), right)

    @pl.loop(0, B)
    def _(b):
        xb = x_ref[b]                       # (56, 224)
        even = xb[:, 0:112]                 # original rows 0,2,...,110
        odd = xb[:, 112:224]                # original rows 1,3,...,111
        eo = jnp.maximum(even, odd)         # max(row 2i, row 2i+1)

        # Output row 0: window rows = {zero pad row, row 0, row 1}
        row0 = jnp.maximum(eo[0:1, :], 0.0)
        # Output rows 1..55: window rows = {row 2i-1, row 2i, row 2i+1}
        #                                = {odd[i-1], even[i], odd[i]}
        rows = jnp.maximum(eo[1:56, :], odd[0:55, :])

        o_ref[b, 0:1, :] = colslide(row0)
        o_ref[b, 1:56, :] = colslide(rows)


def maxpool2d_k3s2p1(x, *, block_imgs=16):
    """Reproduces MaxPool2dNumpy.forward for NCHW float32 input with H=W=112."""
    N, C, H, W = x.shape
    assert H == 112 and W == 112
    x = x.astype(jnp.float32)
    nc = N * C

    # Free (bitcast) reshape into the row-pair layout described above.
    xr = x.reshape(nc, 56, 224)

    # Whole images per block; pick the largest divisor of nc <= block_imgs
    # (block_imgs=16 -> ~0.9 MiB input + ~0.45 MiB output per buffer).
    b = min(block_imgs, nc)
    while nc % b:
        b -= 1

    out_wide = pl.pallas_call(
        _maxpool_kernel,
        out_shape=jax.ShapeDtypeStruct((nc, 56, 112), jnp.float32),
        grid_spec=pltpu.PrefetchScalarGridSpec(
            num_scalar_prefetch=0,
            grid=(nc // b,),
            in_specs=[pl.BlockSpec((b, 56, 224), lambda g: (g, 0, 0))],
            out_specs=pl.BlockSpec((b, 56, 112), lambda g: (g, 0, 0)),
        ),
        compiler_params=pltpu.CompilerParams(
            dimension_semantics=("parallel",)),
    )(xr)

    # TODO(synk): the final stride-2 column downsample (keep even lanes) stays in XLA;
    # Mosaic has no cheap lane-strided compaction, and this pass touches only ~2x the
    # (small) output bytes.
    y = out_wide[:, :, 0::2]                # (nc, 56, 56)
    return y.reshape(N, C, 56, 56)


if __name__ == "__main__":
    # Module has no learnable parameters (kernel_size=3, stride=2, padding=1);
    # its forward requires H = W = 112.
    key = jax.random.PRNGKey(0)
    x = jax.random.normal(key, (2, 4, 112, 112), dtype=jnp.float32)

    y = maxpool2d_k3s2p1(x)
    y = jax.block_until_ready(y)

    # Plain-JAX reference of the exact same numpy algorithm (zero top/left pad,
    # 9 stride-2 views, max-reduce).
    xp = jnp.pad(x, ((0, 0), (0, 0), (1, 0), (1, 0)))
    ref = jnp.max(
        jnp.stack(
            [xp[:, :, r:r + 111:2, c:c + 111:2] for r in range(3) for c in range(3)],
            axis=0),
        axis=0)

    assert y.shape == (2, 4, 56, 56), y.shape
    assert y.dtype == jnp.float32
    assert bool(jnp.allclose(y, ref, atol=0.0, rtol=0.0)), "mismatch vs reference"
    print("KERNEL_OK")
</pallas_src>

<mosaic_0001>
module attributes {stable_mosaic.version = 11 : i64} {
  func.func @_maxpool_kernel(%arg0: i32, %arg1: memref<8x56x224xf32, #tpu.memory_space<vmem>>, %arg2: memref<8x56x112xf32, #tpu.memory_space<vmem>>) attributes {dimension_semantics = [#tpu.dimension_semantics<parallel>], iteration_bounds = array<i64: 1>, scalar_prefetch = 0 : i64, scratch_operands = 0 : i64, tpu.core_type = #tpu.core_type<tc>, window_params = [{transform_indices = @transform_0, window_bounds = array<i64: 8, 56, 224>}, {transform_indices = @transform_1, window_bounds = array<i64: 8, 56, 112>}]} {
    %c0_i32 = arith.constant 0 : i32
    %c8_i32 = arith.constant 8 : i32
    %0 = arith.addi %c0_i32, %c8_i32 : i32
    %c1_i32 = arith.constant 1 : i32
    scf.for %arg3 = %c0_i32 to %0 step %c1_i32  : i32 {
      %c1_i32_1 = arith.constant 1 : i32
      %1 = arith.muli %arg3, %c1_i32_1 : i32
      %c0_i32_2 = arith.constant 0 : i32
      %2 = arith.addi %c0_i32_2, %1 : i32
      %3 = arith.index_cast %2 : i32 to index
      %c0 = arith.constant 0 : index
      %c0_3 = arith.constant 0 : index
      %4 = vector.load %arg1[%3, %c0, %c0_3] : memref<8x56x224xf32, #tpu.memory_space<vmem>>, vector<1x56x224xf32>
      %5 = vector.shape_cast %4 : vector<1x56x224xf32> to vector<56x224xf32>
      %6 = vector.extract_strided_slice %5 {offsets = [0, 0], sizes = [56, 112], strides = [1, 1]} : vector<56x224xf32> to vector<56x112xf32>
      %7 = vector.extract_strided_slice %5 {offsets = [0, 112], sizes = [56, 112], strides = [1, 1]} : vector<56x224xf32> to vector<56x112xf32>
      %8 = arith.maximumf %6, %7 : vector<56x112xf32>
      %9 = vector.extract_strided_slice %8 {offsets = [0, 0], sizes = [1, 112], strides = [1, 1]} : vector<56x112xf32> to vector<1x112xf32>
      %cst = arith.constant 0.000000e+00 : f32
      %10 = vector.broadcast %cst : f32 to vector<1x112xf32>
      %11 = arith.maximumf %9, %10 : vector<1x112xf32>
      %12 = vector.extract_strided_slice %8 {offsets = [1, 0], sizes = [55, 112], strides = [1, 1]} : vector<56x112xf32> to vector<55x112xf32>
      %13 = vector.extract_strided_slice %7 {offsets = [0, 0], sizes = [55, 112], strides = [1, 1]} : vector<56x112xf32> to vector<55x112xf32>
      %14 = arith.maximumf %12, %13 : vector<55x112xf32>
      %cst_4 = arith.constant 0.000000e+00 : f32
      %15 = vector.broadcast %cst_4 : f32 to vector<1x1xf32>
      %16 = vector.extract_strided_slice %11 {offsets = [0, 0], sizes = [1, 111], strides = [1, 1]} : vector<1x112xf32> to vector<1x111xf32>
      %17 = tpu.concatenate %15, %16 in 1 : vector<1x1xf32>, vector<1x111xf32> -> vector<1x112xf32>
      %18 = vector.extract_strided_slice %11 {offsets = [0, 1], sizes = [1, 111], strides = [1, 1]} : vector<1x112xf32> to vector<1x111xf32>
      %19 = tpu.concatenate %18, %15 in 1 : vector<1x111xf32>, vector<1x1xf32> -> vector<1x112xf32>
      %20 = arith.maximumf %11, %17 : vector<1x112xf32>
      %21 = arith.maximumf %20, %19 : vector<1x112xf32>
      %22 = arith.index_cast %2 : i32 to index
      %c0_5 = arith.constant 0 : index
      %c0_6 = arith.constant 0 : index
      %23 = vector.load %arg2[%22, %c0_5, %c0_6] : memref<8x56x112xf32, #tpu.memory_space<vmem>>, vector<1x1x112xf32>
      %24 = vector.shape_cast %23 : vector<1x1x112xf32> to vector<1x112xf32>
      %25 = vector.shape_cast %21 : vector<1x112xf32> to vector<1x1x112xf32>
      tpu.vector_store %arg2[%22, %c0_5, %c0_6], %25 {strides = array<i32>} : memref<8x56x112xf32, #tpu.memory_space<vmem>>, vector<1x1x112xf32>,
      %cst_7 = arith.constant 0.000000e+00 : f32
      %26 = vector.broadcast %cst_7 : f32 to vector<55x1xf32>
      %27 = vector.extract_strided_slice %14 {offsets = [0, 0], sizes = [55, 111], strides = [1, 1]} : vector<55x112xf32> to vector<55x111xf32>
      %28 = tpu.concatenate %26, %27 in 1 : vector<55x1xf32>, vector<55x111xf32> -> vector<55x112xf32>
      %29 = vector.extract_strided_slice %14 {offsets = [0, 1], sizes = [55, 111], strides = [1, 1]} : vector<55x112xf32> to vector<55x111xf32>
      %30 = tpu.concatenate %29, %26 in 1 : vector<55x111xf32>, vector<55x1xf32> -> vector<55x112xf32>
      %31 = arith.maximumf %14, %28 : vector<55x112xf32>
      %32 = arith.maximumf %31, %30 : vector<55x112xf32>
      %33 = arith.index_cast %2 : i32 to index
      %c1 = arith.constant 1 : index
      %c0_8 = arith.constant 0 : index
      %34 = vector.load %arg2[%33, %c1, %c0_8] : memref<8x56x112xf32, #tpu.memory_space<vmem>>, vector<1x55x112xf32>
      %35 = vector.shape_cast %34 : vector<1x55x112xf32> to vector<55x112xf32>
      %36 = vector.shape_cast %32 : vector<55x112xf32> to vector<1x55x112xf32>
      tpu.vector_store %arg2[%33, %c1, %c0_8], %36 {strides = array<i32>} : memref<8x56x112xf32, #tpu.memory_space<vmem>>, vector<1x55x112xf32>,
    }
    %c8_i32_0 = arith.constant 8 : i32
    return
  }
  func.func @transform_0(%arg0: i32) -> (i32, i32, i32) {
    %c0_i32 = arith.constant 0 : i32
    %c0_i32_0 = arith.constant 0 : i32
    %c0_i32_1 = arith.constant 0 : i32
    return %arg0, %c0_i32, %c0_i32_0 : i32, i32, i32
  }
  func.func @transform_1(%arg0: i32) -> (i32, i32, i32) {
    %c0_i32 = arith.constant 0 : i32
    %c0_i32_0 = arith.constant 0 : i32
    %c0_i32_1 = arith.constant 0 : i32
    return %arg0, %c0_i32, %c0_i32_0 : i32, i32, i32
  }
}

</mosaic_0001>

<llo_original>
// kernel: tpu_custom_call.1
$region0: #{tpu_custom_call.1}
  #allocation0 [shape = 'u32[]', space=smem, size = 0x4, offset = 0x4, fixed_abs, tag = 'smem constant byte address 0x4 - core index']
  #allocation1 [shape = 'u32[144,128]{1,0:T(1,128)}', space=vmem, size = 0x12000, scoped, tag = 'internal scratch']
  %s0 = inlined_call_operand.hbm [shape: f32[8,56,224], index: 0, kind: input, shape index: {}]
  %s1 = inlined_call_operand.hbm [shape: f32[8,56,112], index: 1, kind: output, shape index: {}]
  %s2 = sld [smem:[#allocation0]]
  $region25: #{tpu_custom_call.1} parent=0
    _
  %s4 = ssub.s32 1, %s2
  %s5 = scalar_select 0, %s4, %s2
  $region1: #{tpu_custom_call.1} parent=0
    #allocation2 [shape = 'u8[458752]{0}', space=vmem, size = 0x70000, scoped, tag = 'input window, operand 0, single buffered']
    #allocation3 [shape = 's32[1]{0}', space=sflag, size = 0x4, scoped, tag = 'scoped memory for tpu_custom_call.1']
    #allocation4 [shape = 's32[1]{0}', space=sflag, size = 0x4, scoped, tag = 'scoped memory for tpu_custom_call.1']
    #allocation5 [shape = 'u8[229376]{0}', space=vmem, size = 0x38000, scoped, tag = 'output window, operand 0, single buffered']
    %6 = vsyncpa [#allocation3], 0
    %7 = vsyncpa [#allocation4], 0
    // Predicated region
    $region2: #{tpu_custom_call.1} parent=1 // pred_check
      _
    $region3: #{tpu_custom_call.1} parent=1 // pred_check_branch
      %9 = sbr.rel (0) target = $region5
    $region4: #{tpu_custom_call.1} parent=1 // pred_region
      %s11 = ssub.s32 14336, 14336
      %12 = vsyncadd [#allocation3], %s11
      %s13 = sshll.u32 [#allocation2], 4
      %s14 = int_to_ptr.vmem [resolvable:$true] %s13
      %19 = dma.hbm_to_vmem [thread:$0]  %s0, 14336, %s14, [#allocation3], 256, 256, 16
    $region5: #{tpu_custom_call.1} parent=1 // pred_fallthru
      _
    // Predicated region
    $region6: #{tpu_custom_call.1} parent=1 // pred_check
      _
    $region7: #{tpu_custom_call.1} parent=1 // pred_check_branch
      %21 = sbr.rel (0) target = $region9
    $region8: #{tpu_custom_call.1} parent=1 // pred_region
      %22 = dma.done [#allocation3], 14336
    $region9: #{tpu_custom_call.1} parent=1 // pred_fallthru
      _
    loop: start=0, step=1, limit=8
    $region10: #{tpu_custom_call.1} parent=1 // loop_pre_header
      _
    $region11: #{tpu_custom_call.1} parent=1 // loop_header
      %s24 = sphi 0, %s28
      %p25 = scmp.ge.s32.totalorder %s24, 8
    $region12: #{tpu_custom_call.1} parent=1 // loop_header_branch
      %27 = sbr.rel (%p25) target = $region16
    $region13: #{tpu_custom_call.1} parent=1 // loop_body
      %s29 = smul.u32 %s24, 14
      %s30 = smul.addr %s29, 8
      %s31 = scalar_lea.vmem [#allocation2], %s30
      %v32 = vld [vmem:[%s31] sm:$0xff]
      %v33 = vld [vmem:[%s31 + $0x8] sm:$0xff]
      %v34 = vld [vmem:[%s31 + $0x10] sm:$0xff]
      %v35 = vld [vmem:[%s31 + $0x18] sm:$0xff]
      %v36 = vld [vmem:[%s31 + $0x20] sm:$0xff]
      %v37 = vld [vmem:[%s31 + $0x28] sm:$0xff]
      %v38 = vld [vmem:[%s31 + $0x30] sm:$0xff]
      %v39 = vld [vmem:[%s31 + $0x38] sm:$0xff]
      %v40 = vld [vmem:[%s31 + $0x40] sm:$0xff]
      %v41 = vld [vmem:[%s31 + $0x48] sm:$0xff]
      %v42 = vld [vmem:[%s31 + $0x50] sm:$0xff]
      %v43 = vld [vmem:[%s31 + $0x58] sm:$0xff]
      %v44 = vld [vmem:[%s31 + $0x60] sm:$0xff]
      %v45 = vld [vmem:[%s31 + $0x68] sm:$0xff]
      %60 = vrot.lane.b32.xlu0 %v32, 16
      %v61 = vpop.permute.xlu0 %60
      %62 = vrot.lane.b32.xlu0 %v33, 16
      %v63 = vpop.permute.xlu0 %62
      %64 = vrot.lane.b32.xlu0 %v34, 16
      %v65 = vpop.permute.xlu0 %64
      %66 = vrot.lane.b32.xlu0 %v35, 16
      %v67 = vpop.permute.xlu0 %66
      %68 = vrot.lane.b32.xlu0 %v36, 16
      %v69 = vpop.permute.xlu0 %68
      %70 = vrot.lane.b32.xlu0 %v37, 16
      %v71 = vpop.permute.xlu0 %70
      %72 = vrot.lane.b32.xlu0 %v38, 16
      %v73 = vpop.permute.xlu0 %72
      %74 = vrot.lane.b32.xlu0 %v39, 16
      %v75 = vpop.permute.xlu0 %74
      %76 = vrot.lane.b32.xlu0 %v40, 16
      %v77 = vpop.permute.xlu0 %76
      %78 = vrot.lane.b32.xlu0 %v41, 16
      %v79 = vpop.permute.xlu0 %78
      %80 = vrot.lane.b32.xlu0 %v42, 16
      %v81 = vpop.permute.xlu0 %80
      %82 = vrot.lane.b32.xlu0 %v43, 16
      %v83 = vpop.permute.xlu0 %82
      %84 = vrot.lane.b32.xlu0 %v44, 16
      %v85 = vpop.permute.xlu0 %84
      %86 = vrot.lane.b32.xlu0 %v45, 16
      %v87 = vpop.permute.xlu0 %86
      %vm88 = vcmask 130048
      %v89 = vsel %vm88, %v61, %v63
      %v90 = vsel %vm88, %v65, %v67
      %v91 = vsel %vm88, %v69, %v71
      %v92 = vsel %vm88, %v73, %v75
      %v93 = vsel %vm88, %v77, %v79
      %v94 = vsel %vm88, %v81, %v83
      %v95 = vsel %vm88, %v85, %v87
      %v103 = vmax.f32 %v32, %v89
      %v104 = vmax.f32 %v34, %v90
      %v105 = vmax.f32 %v36, %v91
      %v106 = vmax.f32 %v38, %v92
      %v107 = vmax.f32 %v40, %v93
      %v108 = vmax.f32 %v42, %v94
      %v109 = vmax.f32 %v44, %v95
      %v110 = vmax.f32 %v103, 0.0
      %vm111 = vcmask 1040384
      %v112 = vrot.slane %v32, 7
      %v113 = vrot.slane %v33, 7
      %v114 = vrot.slane %v34, 7
      %v115 = vsel %vm111, %v112, %v114
      %v116 = vrot.slane %v35, 7
      %v117 = vsel %vm111, %v113, %v116
      %v118 = vrot.slane %v36, 7
      %v119 = vsel %vm111, %v114, %v118
      %v120 = vrot.slane %v37, 7
      %v121 = vsel %vm111, %v116, %v120
      %v122 = vrot.slane %v38, 7
      %v123 = vsel %vm111, %v118, %v122
      %v124 = vrot.slane %v39, 7
      %v125 = vsel %vm111, %v120, %v124
      %v126 = vrot.slane %v40, 7
      %v127 = vsel %vm111, %v122, %v126
      %v128 = vrot.slane %v41, 7
      %v129 = vsel %vm111, %v124, %v128
      %v130 = vrot.slane %v42, 7
      %v131 = vsel %vm111, %v126, %v130
      %v132 = vrot.slane %v43, 7
      %v133 = vsel %vm111, %v128, %v132
      %v134 = vrot.slane %v44, 7
      %v135 = vsel %vm111, %v130, %v134
      %v136 = vrot.slane %v45, 7
      %v137 = vsel %vm111, %v132, %v136
      %138 = vrot.lane.b32.xlu0 %v112, 16
      %v139 = vpop.permute.xlu0 %138
      %140 = vrot.lane.b32.xlu0 %v113, 16
      %v141 = vpop.permute.xlu0 %140
      %142 = vrot.lane.b32.xlu0 %v115, 16
      %v143 = vpop.permute.xlu0 %142
      %144 = vrot.lane.b32.xlu0 %v117, 16
      %v145 = vpop.permute.xlu0 %144
      %146 = vrot.lane.b32.xlu0 %v119, 16
      %v147 = vpop.permute.xlu0 %146
      %148 = vrot.lane.b32.xlu0 %v121, 16
      %v149 = vpop.permute.xlu0 %148
      %150 = vrot.lane.b32.xlu0 %v123, 16
      %v151 = vpop.permute.xlu0 %150
      %152 = vrot.lane.b32.xlu0 %v125, 16
      %v153 = vpop.permute.xlu0 %152
      %154 = vrot.lane.b32.xlu0 %v127, 16
      %v155 = vpop.permute.xlu0 %154
      %156 = vrot.lane.b32.xlu0 %v129, 16
      %v157 = vpop.permute.xlu0 %156
      %158 = vrot.lane.b32.xlu0 %v131, 16
      %v159 = vpop.permute.xlu0 %158
      %160 = vrot.lane.b32.xlu0 %v133, 16
      %v161 = vpop.permute.xlu0 %160
      %162 = vrot.lane.b32.xlu0 %v135, 16
      %v163 = vpop.permute.xlu0 %162
      %164 = vrot.lane.b32.xlu0 %v137, 16
      %v165 = vpop.permute.xlu0 %164
      %v166 = vsel %vm88, %v139, %v141
      %v167 = vsel %vm88, %v143, %v145
      %v168 = vsel %vm88, %v147, %v149
      %v169 = vsel %vm88, %v151, %v153
      %v170 = vsel %vm88, %v155, %v157
      %v171 = vsel %vm88, %v159, %v161
      %v172 = vsel %vm88, %v163, %v165
      %v180 = vmax.f32 %v103, %v166
      %v181 = vmax.f32 %v104, %v167
      %v182 = vmax.f32 %v105, %v168
      %v183 = vmax.f32 %v106, %v169
      %v184 = vmax.f32 %v107, %v170
      %v185 = vmax.f32 %v108, %v171
      %v186 = vmax.f32 %v109, %v172
      %188 = vrot.lane.b32.xlu0 %v110, 1
      %v189 = vpop.permute.xlu0 %188
      %vm191 = vcmask 7168
      %v192 = vsel %vm191, 0.0, %v189
      %193 = vrot.lane.b32.xlu0 %v110, 127
      %v194 = vpop.permute.xlu0 %193
      %vm196 = vcmask 908288
      %v197 = vsel %vm196, %v194, 0.0
      %v198 = vmax.f32 %v110, %v192
      %v199 = vmax.f32 %v198, %v197
      %s200 = smul.u32 %s24, 56
      %s201 = scalar_lea.vmem [#allocation5], %s200
      %vm202 = vcmask 909312
      %203 = vst.msk [vmem:[%s201] sm:$0x1] %vm202, %v199
      %vm211 = vcmask 1046528
      %v212 = vrot.slane %v180, 1
      %v213 = vrot.slane %v181, 1
      %v214 = vsel %vm211, %v212, %v213
      %v215 = vrot.slane %v182, 1
      %v216 = vsel %vm211, %v213, %v215
      %v217 = vrot.slane %v183, 1
      %v218 = vsel %vm211, %v215, %v217
      %v219 = vrot.slane %v184, 1
      %v220 = vsel %vm211, %v217, %v219
      %v221 = vrot.slane %v185, 1
      %v222 = vsel %vm211, %v219, %v221
      %v223 = vrot.slane %v186, 1
      %v224 = vsel %vm211, %v221, %v223
      %225 = vrot.lane.b32.xlu0 %v214, 1
      %v226 = vpop.permute.xlu0 %225
      %227 = vrot.lane.b32.xlu0 %v216, 1
      %v228 = vpop.permute.xlu0 %227
      %229 = vrot.lane.b32.xlu0 %v218, 1
      %v230 = vpop.permute.xlu0 %229
      %231 = vrot.lane.b32.xlu0 %v220, 1
      %v232 = vpop.permute.xlu0 %231
      %233 = vrot.lane.b32.xlu0 %v222, 1
      %v234 = vpop.permute.xlu0 %233
      %235 = vrot.lane.b32.xlu0 %v224, 1
      %v236 = vpop.permute.xlu0 %235
      %237 = vrot.lane.b32.xlu0 %v223, 1
      %v238 = vpop.permute.xlu0 %237
      %v246 = vsel %vm191, 0.0, %v226
      %v247 = vsel %vm191, 0.0, %v228
      %v248 = vsel %vm191, 0.0, %v230
      %v249 = vsel %vm191, 0.0, %v232
      %v250 = vsel %vm191, 0.0, %v234
      %v251 = vsel %vm191, 0.0, %v236
      %v252 = vsel %vm191, 0.0, %v238
      %253 = vrot.lane.b32.xlu0 %v180, 127
      %v254 = vpop.permute.xlu0 %253
      %255 = vrot.lane.b32.xlu0 %v181, 127
      %v256 = vpop.permute.xlu0 %255
      %257 = vrot.lane.b32.xlu0 %v182, 127
      %v258 = vpop.permute.xlu0 %257
      %259 = vrot.lane.b32.xlu0 %v183, 127
      %v260 = vpop.permute.xlu0 %259
      %261 = vrot.lane.b32.xlu0 %v184, 127
      %v262 = vpop.permute.xlu0 %261
      %263 = vrot.lane.b32.xlu0 %v185, 127
      %v264 = vpop.permute.xlu0 %263
      %265 = vrot.lane.b32.xlu0 %v186, 127
      %v266 = vpop.permute.xlu0 %265
      %v274 = vsel %vm196, %v254, 0.0
      %v275 = vsel %vm196, %v256, 0.0
      %v276 = vsel %vm196, %v258, 0.0
      %v277 = vsel %vm196, %v260, 0.0
      %v278 = vsel %vm196, %v262, 0.0
      %v279 = vsel %vm196, %v264, 0.0
      %v280 = vsel %vm196, %v266, 0.0
      %v288 = vrot.slane %v246, 7
      %v289 = vrot.slane %v247, 7
      %v290 = vsel %vm111, %v288, %v289
      %v291 = vrot.slane %v248, 7
      %v292 = vsel %vm111, %v289, %v291
      %v293 = vrot.slane %v249, 7
      %v294 = vsel %vm111, %v291, %v293
      %v295 = vrot.slane %v250, 7
      %v296 = vsel %vm111, %v293, %v295
      %v297 = vrot.slane %v251, 7
      %v298 = vsel %vm111, %v295, %v297
      %v299 = vrot.slane %v252, 7
      %v300 = vsel %vm111, %v297, %v299
      %v308 = vmax.f32 %v180, %v288
      %v309 = vmax.f32 %v181, %v290
      %v310 = vmax.f32 %v182, %v292
      %v311 = vmax.f32 %v183, %v294
      %v312 = vmax.f32 %v184, %v296
      %v313 = vmax.f32 %v185, %v298
      %v314 = vmax.f32 %v186, %v300
      %v315 = vmax.f32 %v308, %v274
      %v316 = vmax.f32 %v309, %v275
      %v317 = vmax.f32 %v310, %v276
      %v318 = vmax.f32 %v311, %v277
      %v319 = vmax.f32 %v312, %v278
      %v320 = vmax.f32 %v313, %v279
      %v321 = vmax.f32 %v314, %v280
      %vm322 = vcmask 916481
      %323 = vst.msk [vmem:[%s201] sm:$0xfe] %vm322, %v315
      %vm324 = vcmask 916480
      %325 = vst.msk [vmem:[%s201 + $0x8] sm:$0xff] %vm324, %v316
      %326 = vst.msk [vmem:[%s201 + $0x10] sm:$0xff] %vm324, %v317
      %327 = vst.msk [vmem:[%s201 + $0x18] sm:$0xff] %vm324, %v318
      %328 = vst.msk [vmem:[%s201 + $0x20] sm:$0xff] %vm324, %v319
      %329 = vst.msk [vmem:[%s201 + $0x28] sm:$0xff] %vm324, %v320
      %330 = vst.msk [vmem:[%s201 + $0x30] sm:$0xff] %vm324, %v321
    $region14: #{tpu_custom_call.1} parent=1 // loop_footer
      %s28 = sadd.s32 1, %s24
    $region15: #{tpu_custom_call.1} parent=1 // loop_footer_branch
      %23 = sbr.rel target = $region11
    $region16: #{tpu_custom_call.1} parent=1 // loop_exit
      _
    // Predicated region
    $region17: #{tpu_custom_call.1} parent=1 // pred_check
      _
    $region18: #{tpu_custom_call.1} parent=1 // pred_check_branch
      %332 = sbr.rel (0) target = $region20
    $region19: #{tpu_custom_call.1} parent=1 // pred_region
      %s334 = ssub.s32 7168, 7168
      %335 = vsyncadd [#allocation4], %s334
      %s336 = sshll.u32 [#allocation5], 4
      %s337 = int_to_ptr.vmem [resolvable:$true] %s336
      %342 = dma.vmem_to_hbm [thread:$0]  %s337, 7168, %s1, [#allocation4], 128, 128, 8
    $region20: #{tpu_custom_call.1} parent=1 // pred_fallthru
      _
    // Predicated region
    $region21: #{tpu_custom_call.1} parent=1 // pred_check
      _
    $region22: #{tpu_custom_call.1} parent=1 // pred_check_branch
      %344 = sbr.rel (0) target = $region24
    $region23: #{tpu_custom_call.1} parent=1 // pred_region
      %345 = dma.done [#allocation4], 7168
    $region24: #{tpu_custom_call.1} parent=1 // pred_fallthru
      _
    %346 = vsyncpa [#allocation3], 1
    %347 = vsyncpa [#allocation4], 1

</llo_original>
